<compile_context>
chip_gen: v5e
topology: v5e:2x2
jax: 0.10.0
libtpu: 0.0.40
codegen_flags: <defaults>
</compile_context>

<pallas_src>
import functools

import jax
import jax.numpy as jnp
from jax.experimental import pallas as pl
from jax.experimental.pallas import tpu as pltpu

MAX_POSITIONS = 512                       # BairuEncoder.max_positions()
_RESIDENT_TABLE_BYTES = 4 * 1024 * 1024   # small-vocab fast-path threshold
_FAST_PATH_VMEM_BUDGET = 12 * 1024 * 1024 # stay under v5e's 16 MiB scoped default


def _pick_tile(s, min_tile, cap):
    """Largest tile (multiple of min_tile, <= cap) that divides S."""
    c = min(cap, s)
    c -= c % min_tile
    while c > min_tile:
        if s % c == 0:
            return c
        c -= min_tile
    return min_tile


def _resident_kernel(tok_ref, emb_ref, pos_ref, out_ref, row_buf, *,
                     tile, n_pos_blocks):
    """Small-vocab fast path.

    tok_ref : SMEM (B*S,) int32     scalar-prefetched flat token ids
    emb_ref : VMEM (V, D)           embedding table, DMA'd once (constant block)
    pos_ref : VMEM (S, D)           positional table, DMA'd once (constant block)
    out_ref : VMEM (tile, D)        lane-dense output slab
    row_buf : VMEM (tile, D)        gather staging buffer
    The gather is `tile` in-VMEM dynamic row loads -- no per-row DMAs.
    """
    i = pl.program_id(0)
    base = i * tile
    for r in range(tile):                         # static unroll
        t = tok_ref[base + r]                     # cheap SMEM scalar read
        row_buf[pl.ds(r, 1), :] = emb_ref[pl.ds(t, 1), :]
    pos_start = pl.multiple_of((i % n_pos_blocks) * tile, tile)
    out_ref[...] = (row_buf[...]
                    + pos_ref[pl.ds(pos_start, tile), :]).astype(out_ref.dtype)


def _gather_kernel(tok_ref, emb_hbm, pos_ref, out_ref, row_buf, sems, *,
                   tile, n_inner, n_pos_blocks):
    """Large-vocab HBM row-gather path, double-buffered across grid steps.

    tok_ref : SMEM (B*S,) int32     scalar-prefetched flat token ids
    emb_hbm : HBM  (V, D)           embedding table (never copied wholesale)
    pos_ref : VMEM (S, D)           positional table, resident (constant block)
    out_ref : VMEM (tile, D)        lane-dense output slab
    row_buf : VMEM (2, tile, D)     double-buffered gather landing buffer
    sems    : DMA semaphores (2,)   one shared, byte-counted sem per slot
    """
    i = pl.program_id(1)
    t_idx = pl.program_id(0) * n_inner + i        # flat tile index
    slot = i % 2

    def issue(tile_idx, into_slot):
        base = tile_idx * tile
        for r in range(tile):                     # static unroll
            t = tok_ref[base + r]
            pltpu.make_async_copy(emb_hbm.at[t],
                                  row_buf.at[into_slot, r],
                                  sems.at[into_slot]).start()

    # Prime the pipeline at the start of every outer ("parallel") chunk.
    @pl.when(i == 0)
    def _():
        issue(t_idx, slot)

    # One counted wait for all `tile` row copies of the current slot
    # (DMA semaphores count bytes; the full-buffer descriptor waits for the
    # sum of the per-row transfers).
    pltpu.make_async_copy(row_buf.at[slot], row_buf.at[slot],
                          sems.at[slot]).wait()

    # Prefetch the next tile's rows into the other slot so its descriptor
    # issue + HBM latency hide under this tile's add and output writeback.
    @pl.when(i + 1 < n_inner)
    def _():
        issue(t_idx + 1, 1 - slot)

    pos_start = pl.multiple_of((t_idx % n_pos_blocks) * tile, tile)
    out_ref[...] = (row_buf[slot]
                    + pos_ref[pl.ds(pos_start, tile), :]).astype(out_ref.dtype)


def bairu_encoder_forward(src_tokens, embed_table, pos_embed, src_length=None,
                          *, force_hbm_gather=False):
    """src_tokens: [B, S] int32 -> encoder output [B, S, D] (table dtype).

    src_length is accepted for interface parity but (like the base class) is
    not used in the computation.
    """
    del src_length
    B, S = src_tokens.shape
    V, D = embed_table.shape
    itemsize = jnp.dtype(embed_table.dtype).itemsize
    pos_itemsize = jnp.dtype(pos_embed.dtype).itemsize
    min_tile = 16 if itemsize < 4 else 8          # respect (8,128)/(16,128) tiles

    assert S <= MAX_POSITIONS, "sequence exceeds max_positions()"
    assert pos_embed.shape == (S, D)
    assert D % 128 == 0, "embed dim must be lane-aligned (multiple of 128)"
    assert S % min_tile == 0, "src_len must be sublane-aligned"

    n_tok = B * S
    # Flatten ids for SMEM scalar prefetch; clamp so an out-of-range id cannot
    # trigger an out-of-bounds gather.
    tok_flat = jnp.clip(src_tokens.reshape(n_tok).astype(jnp.int32), 0, V - 1)

    table_bytes = V * D * itemsize
    pos_bytes = S * D * pos_itemsize

    # ---------- small-vocab fast path: VMEM-resident table -------------------
    tile_fast = _pick_tile(S, min_tile, 256)
    fast_vmem = (2 * table_bytes + 2 * pos_bytes
                 + 3 * tile_fast * D * itemsize)          # 2x out blocks + row_buf
    use_resident = (not force_hbm_gather
                    and table_bytes <= _RESIDENT_TABLE_BYTES
                    and fast_vmem <= _FAST_PATH_VMEM_BUDGET)

    if use_resident:
        tile = tile_fast
        n_tiles = n_tok // tile
        n_pos_blocks = S // tile
        kernel = functools.partial(_resident_kernel, tile=tile,
                                   n_pos_blocks=n_pos_blocks)
        out_flat = pl.pallas_call(
            kernel,
            out_shape=jax.ShapeDtypeStruct((n_tok, D), embed_table.dtype),
            grid_spec=pltpu.PrefetchScalarGridSpec(
                num_scalar_prefetch=1,
                grid=(n_tiles,),
                in_specs=[
                    # Constant block index => DMA'd once, stays resident.
                    pl.BlockSpec((V, D), lambda i, tok: (0, 0)),
                    pl.BlockSpec((S, D), lambda i, tok: (0, 0)),
                ],
                out_specs=pl.BlockSpec((tile, D), lambda i, tok: (i, 0)),
                scratch_shapes=[pltpu.VMEM((tile, D), embed_table.dtype)],
            ),
            compiler_params=pltpu.CompilerParams(
                dimension_semantics=("parallel",),   # no carried state here
            ),
        )(tok_flat, embed_table, pos_embed)
        return out_flat.reshape(B, S, D)

    # ---------- large-vocab path: HBM row-gather, double-buffered ------------
    tile = _pick_tile(S, min_tile, 128)
    n_tiles = n_tok // tile
    n_pos_blocks = S // tile
    # Outer "parallel" axis keeps v7x megacore sharding; inner "arbitrary"
    # axis carries the 2-slot gather double buffer.
    n_outer = 2 if (n_tiles % 2 == 0 and n_tiles >= 4) else 1
    n_inner = n_tiles // n_outer

    kernel = functools.partial(_gather_kernel, tile=tile, n_inner=n_inner,
                               n_pos_blocks=n_pos_blocks)
    out_flat = pl.pallas_call(
        kernel,
        out_shape=jax.ShapeDtypeStruct((n_tok, D), embed_table.dtype),
        grid_spec=pltpu.PrefetchScalarGridSpec(
            num_scalar_prefetch=1,                 # tok_flat -> SMEM
            grid=(n_outer, n_inner),
            in_specs=[
                # Table stays in HBM; rows gathered manually.
                pl.BlockSpec(memory_space=pl.ANY),
                # pos_embed resident in VMEM (constant block index).
                pl.BlockSpec((S, D), lambda o, i, tok: (0, 0)),
            ],
            out_specs=pl.BlockSpec((tile, D),
                                   lambda o, i, tok: (o * n_inner + i, 0)),
            scratch_shapes=[
                pltpu.VMEM((2, tile, D), embed_table.dtype),  # 2-slot gather buf
                pltpu.SemaphoreType.DMA((2,)),                # one shared sem/slot
            ],
        ),
        compiler_params=pltpu.CompilerParams(
            dimension_semantics=("parallel", "arbitrary"),
        ),
    )(tok_flat, embed_table, pos_embed)
    return out_flat.reshape(B, S, D)


def _reference(src_tokens, embed_table, pos_embed):
    return jnp.take(embed_table, src_tokens, axis=0) + pos_embed[None, :, :]


if __name__ == "__main__":
    # Small deterministic shapes implied by the interface.
    B, S = 2, 16         # batch_size, src_len
    V, D = 512, 128      # vocab ("dictionary") size, embed dim

    key = jax.random.PRNGKey(0)
    k_tok, k_emb, k_pos = jax.random.split(key, 3)

    src_tokens = jax.random.randint(k_tok, (B, S), 0, V, dtype=jnp.int32)
    src_length = jnp.full((B,), S, dtype=jnp.int32)   # unused by the base class
    embed_table = jax.random.normal(k_emb, (V, D), dtype=jnp.float32) * 0.02
    pos_embed = (jax.random.normal(k_pos, (MAX_POSITIONS, D), dtype=jnp.float32)
                 * 0.02)[:S]

    ref = _reference(src_tokens, embed_table, pos_embed)

    # Fast path (VMEM-resident table) — selected automatically at these shapes.
    out_fast = bairu_encoder_forward(src_tokens, embed_table, pos_embed,
                                     src_length)
    out_fast = jax.block_until_ready(out_fast)
    assert out_fast.shape == (B, S, D)
    assert jnp.allclose(out_fast, ref, atol=1e-6, rtol=1e-6)

    # Large-vocab HBM row-gather path, forced so it is exercised as well.
    out_gather = bairu_encoder_forward(src_tokens, embed_table, pos_embed,
                                       src_length, force_hbm_gather=True)
    out_gather = jax.block_until_ready(out_gather)
    assert out_gather.shape == (B, S, D)
    assert jnp.allclose(out_gather, ref, atol=1e-6, rtol=1e-6)

    print("KERNEL_OK")
</pallas_src>

<mosaic_0001>
module attributes {stable_mosaic.version = 11 : i64} {
  func.func @_resident_kernel(%arg0: i32, %arg1: memref<32xi32, #tpu.memory_space<smem>>, %arg2: memref<512x128xf32, #tpu.memory_space<vmem>>, %arg3: memref<16x128xf32, #tpu.memory_space<vmem>>, %arg4: memref<16x128xf32, #tpu.memory_space<vmem>>, %arg5: memref<16x128xf32, #tpu.memory_space<vmem>>) attributes {dimension_semantics = [#tpu.dimension_semantics<parallel>], iteration_bounds = array<i64: 2>, scalar_prefetch = 1 : i64, scratch_operands = 1 : i64, tpu.core_type = #tpu.core_type<tc>, window_params = [{pipeline_mode = #tpu.pipeline_mode<synchronous>, transform_indices = @transform_0, window_bounds = array<i64: 512, 128>}, {pipeline_mode = #tpu.pipeline_mode<synchronous>, transform_indices = @transform_1, window_bounds = array<i64: 16, 128>}, {transform_indices = @transform_2, window_bounds = array<i64: 16, 128>}]} {
    %c16_i32 = arith.constant 16 : i32
    %0 = arith.muli %arg0, %c16_i32 : i32
    %c0_i32 = arith.constant 0 : i32
    %1 = arith.addi %0, %c0_i32 : i32
    %2 = arith.index_cast %1 : i32 to index
    %3 = memref.load %arg1[%2] : memref<32xi32, #tpu.memory_space<smem>>
    %4 = arith.index_cast %3 : i32 to index
    %c0 = arith.constant 0 : index
    %5 = vector.load %arg2[%4, %c0] : memref<512x128xf32, #tpu.memory_space<vmem>>, vector<1x128xf32>
    %c0_0 = arith.constant 0 : index
    %c0_1 = arith.constant 0 : index
    %6 = vector.load %arg5[%c0_0, %c0_1] : memref<16x128xf32, #tpu.memory_space<vmem>>, vector<1x128xf32>
    tpu.vector_store %arg5[%c0_0, %c0_1], %5 {strides = array<i32>} : memref<16x128xf32, #tpu.memory_space<vmem>>, vector<1x128xf32>,
    %c1_i32 = arith.constant 1 : i32
    %7 = arith.addi %0, %c1_i32 : i32
    %8 = arith.index_cast %7 : i32 to index
    %9 = memref.load %arg1[%8] : memref<32xi32, #tpu.memory_space<smem>>
    %10 = arith.index_cast %9 : i32 to index
    %c0_2 = arith.constant 0 : index
    %11 = vector.load %arg2[%10, %c0_2] : memref<512x128xf32, #tpu.memory_space<vmem>>, vector<1x128xf32>
    %c1 = arith.constant 1 : index
    %c0_3 = arith.constant 0 : index
    %12 = vector.load %arg5[%c1, %c0_3] : memref<16x128xf32, #tpu.memory_space<vmem>>, vector<1x128xf32>
    tpu.vector_store %arg5[%c1, %c0_3], %11 {strides = array<i32>} : memref<16x128xf32, #tpu.memory_space<vmem>>, vector<1x128xf32>,
    %c2_i32 = arith.constant 2 : i32
    %13 = arith.addi %0, %c2_i32 : i32
    %14 = arith.index_cast %13 : i32 to index
    %15 = memref.load %arg1[%14] : memref<32xi32, #tpu.memory_space<smem>>
    %16 = arith.index_cast %15 : i32 to index
    %c0_4 = arith.constant 0 : index
    %17 = vector.load %arg2[%16, %c0_4] : memref<512x128xf32, #tpu.memory_space<vmem>>, vector<1x128xf32>
    %c2 = arith.constant 2 : index
    %c0_5 = arith.constant 0 : index
    %18 = vector.load %arg5[%c2, %c0_5] : memref<16x128xf32, #tpu.memory_space<vmem>>, vector<1x128xf32>
    tpu.vector_store %arg5[%c2, %c0_5], %17 {strides = array<i32>} : memref<16x128xf32, #tpu.memory_space<vmem>>, vector<1x128xf32>,
    %c3_i32 = arith.constant 3 : i32
    %19 = arith.addi %0, %c3_i32 : i32
    %20 = arith.index_cast %19 : i32 to index
    %21 = memref.load %arg1[%20] : memref<32xi32, #tpu.memory_space<smem>>
    %22 = arith.index_cast %21 : i32 to index
    %c0_6 = arith.constant 0 : index
    %23 = vector.load %arg2[%22, %c0_6] : memref<512x128xf32, #tpu.memory_space<vmem>>, vector<1x128xf32>
    %c3 = arith.constant 3 : index
    %c0_7 = arith.constant 0 : index
    %24 = vector.load %arg5[%c3, %c0_7] : memref<16x128xf32, #tpu.memory_space<vmem>>, vector<1x128xf32>
    tpu.vector_store %arg5[%c3, %c0_7], %23 {strides = array<i32>} : memref<16x128xf32, #tpu.memory_space<vmem>>, vector<1x128xf32>,
    %c4_i32 = arith.constant 4 : i32
    %25 = arith.addi %0, %c4_i32 : i32
    %26 = arith.index_cast %25 : i32 to index
    %27 = memref.load %arg1[%26] : memref<32xi32, #tpu.memory_space<smem>>
    %28 = arith.index_cast %27 : i32 to index
    %c0_8 = arith.constant 0 : index
    %29 = vector.load %arg2[%28, %c0_8] : memref<512x128xf32, #tpu.memory_space<vmem>>, vector<1x128xf32>
    %c4 = arith.constant 4 : index
    %c0_9 = arith.constant 0 : index
    %30 = vector.load %arg5[%c4, %c0_9] : memref<16x128xf32, #tpu.memory_space<vmem>>, vector<1x128xf32>
    tpu.vector_store %arg5[%c4, %c0_9], %29 {strides = array<i32>} : memref<16x128xf32, #tpu.memory_space<vmem>>, vector<1x128xf32>,
    %c5_i32 = arith.constant 5 : i32
    %31 = arith.addi %0, %c5_i32 : i32
    %32 = arith.index_cast %31 : i32 to index
    %33 = memref.load %arg1[%32] : memref<32xi32, #tpu.memory_space<smem>>
    %34 = arith.index_cast %33 : i32 to index
    %c0_10 = arith.constant 0 : index
    %35 = vector.load %arg2[%34, %c0_10] : memref<512x128xf32, #tpu.memory_space<vmem>>, vector<1x128xf32>
    %c5 = arith.constant 5 : index
    %c0_11 = arith.constant 0 : index
    %36 = vector.load %arg5[%c5, %c0_11] : memref<16x128xf32, #tpu.memory_space<vmem>>, vector<1x128xf32>
    tpu.vector_store %arg5[%c5, %c0_11], %35 {strides = array<i32>} : memref<16x128xf32, #tpu.memory_space<vmem>>, vector<1x128xf32>,
    %c6_i32 = arith.constant 6 : i32
    %37 = arith.addi %0, %c6_i32 : i32
    %38 = arith.index_cast %37 : i32 to index
    %39 = memref.load %arg1[%38] : memref<32xi32, #tpu.memory_space<smem>>
    %40 = arith.index_cast %39 : i32 to index
    %c0_12 = arith.constant 0 : index
    %41 = vector.load %arg2[%40, %c0_12] : memref<512x128xf32, #tpu.memory_space<vmem>>, vector<1x128xf32>
    %c6 = arith.constant 6 : index
    %c0_13 = arith.constant 0 : index
    %42 = vector.load %arg5[%c6, %c0_13] : memref<16x128xf32, #tpu.memory_space<vmem>>, vector<1x128xf32>
    tpu.vector_store %arg5[%c6, %c0_13], %41 {strides = array<i32>} : memref<16x128xf32, #tpu.memory_space<vmem>>, vector<1x128xf32>,
    %c7_i32 = arith.constant 7 : i32
    %43 = arith.addi %0, %c7_i32 : i32
    %44 = arith.index_cast %43 : i32 to index
    %45 = memref.load %arg1[%44] : memref<32xi32, #tpu.memory_space<smem>>
    %46 = arith.index_cast %45 : i32 to index
    %c0_14 = arith.constant 0 : index
    %47 = vector.load %arg2[%46, %c0_14] : memref<512x128xf32, #tpu.memory_space<vmem>>, vector<1x128xf32>
    %c7 = arith.constant 7 : index
    %c0_15 = arith.constant 0 : index
    %48 = vector.load %arg5[%c7, %c0_15] : memref<16x128xf32, #tpu.memory_space<vmem>>, vector<1x128xf32>
    tpu.vector_store %arg5[%c7, %c0_15], %47 {strides = array<i32>} : memref<16x128xf32, #tpu.memory_space<vmem>>, vector<1x128xf32>,
    %c8_i32 = arith.constant 8 : i32
    %49 = arith.addi %0, %c8_i32 : i32
    %50 = arith.index_cast %49 : i32 to index
    %51 = memref.load %arg1[%50] : memref<32xi32, #tpu.memory_space<smem>>
    %52 = arith.index_cast %51 : i32 to index
    %c0_16 = arith.constant 0 : index
    %53 = vector.load %arg2[%52, %c0_16] : memref<512x128xf32, #tpu.memory_space<vmem>>, vector<1x128xf32>
    %c8 = arith.constant 8 : index
    %c0_17 = arith.constant 0 : index
    %54 = vector.load %arg5[%c8, %c0_17] : memref<16x128xf32, #tpu.memory_space<vmem>>, vector<1x128xf32>
    tpu.vector_store %arg5[%c8, %c0_17], %53 {strides = array<i32>} : memref<16x128xf32, #tpu.memory_space<vmem>>, vector<1x128xf32>,
    %c9_i32 = arith.constant 9 : i32
    %55 = arith.addi %0, %c9_i32 : i32
    %56 = arith.index_cast %55 : i32 to index
    %57 = memref.load %arg1[%56] : memref<32xi32, #tpu.memory_space<smem>>
    %58 = arith.index_cast %57 : i32 to index
    %c0_18 = arith.constant 0 : index
    %59 = vector.load %arg2[%58, %c0_18] : memref<512x128xf32, #tpu.memory_space<vmem>>, vector<1x128xf32>
    %c9 = arith.constant 9 : index
    %c0_19 = arith.constant 0 : index
    %60 = vector.load %arg5[%c9, %c0_19] : memref<16x128xf32, #tpu.memory_space<vmem>>, vector<1x128xf32>
    tpu.vector_store %arg5[%c9, %c0_19], %59 {strides = array<i32>} : memref<16x128xf32, #tpu.memory_space<vmem>>, vector<1x128xf32>,
    %c10_i32 = arith.constant 10 : i32
    %61 = arith.addi %0, %c10_i32 : i32
    %62 = arith.index_cast %61 : i32 to index
    %63 = memref.load %arg1[%62] : memref<32xi32, #tpu.memory_space<smem>>
    %64 = arith.index_cast %63 : i32 to index
    %c0_20 = arith.constant 0 : index
    %65 = vector.load %arg2[%64, %c0_20] : memref<512x128xf32, #tpu.memory_space<vmem>>, vector<1x128xf32>
    %c10 = arith.constant 10 : index
    %c0_21 = arith.constant 0 : index
    %66 = vector.load %arg5[%c10, %c0_21] : memref<16x128xf32, #tpu.memory_space<vmem>>, vector<1x128xf32>
    tpu.vector_store %arg5[%c10, %c0_21], %65 {strides = array<i32>} : memref<16x128xf32, #tpu.memory_space<vmem>>, vector<1x128xf32>,
    %c11_i32 = arith.constant 11 : i32
    %67 = arith.addi %0, %c11_i32 : i32
    %68 = arith.index_cast %67 : i32 to index
    %69 = memref.load %arg1[%68] : memref<32xi32, #tpu.memory_space<smem>>
    %70 = arith.index_cast %69 : i32 to index
    %c0_22 = arith.constant 0 : index
    %71 = vector.load %arg2[%70, %c0_22] : memref<512x128xf32, #tpu.memory_space<vmem>>, vector<1x128xf32>
    %c11 = arith.constant 11 : index
    %c0_23 = arith.constant 0 : index
    %72 = vector.load %arg5[%c11, %c0_23] : memref<16x128xf32, #tpu.memory_space<vmem>>, vector<1x128xf32>
    tpu.vector_store %arg5[%c11, %c0_23], %71 {strides = array<i32>} : memref<16x128xf32, #tpu.memory_space<vmem>>, vector<1x128xf32>,
    %c12_i32 = arith.constant 12 : i32
    %73 = arith.addi %0, %c12_i32 : i32
    %74 = arith.index_cast %73 : i32 to index
    %75 = memref.load %arg1[%74] : memref<32xi32, #tpu.memory_space<smem>>
    %76 = arith.index_cast %75 : i32 to index
    %c0_24 = arith.constant 0 : index
    %77 = vector.load %arg2[%76, %c0_24] : memref<512x128xf32, #tpu.memory_space<vmem>>, vector<1x128xf32>
    %c12 = arith.constant 12 : index
    %c0_25 = arith.constant 0 : index
    %78 = vector.load %arg5[%c12, %c0_25] : memref<16x128xf32, #tpu.memory_space<vmem>>, vector<1x128xf32>
    tpu.vector_store %arg5[%c12, %c0_25], %77 {strides = array<i32>} : memref<16x128xf32, #tpu.memory_space<vmem>>, vector<1x128xf32>,
    %c13_i32 = arith.constant 13 : i32
    %79 = arith.addi %0, %c13_i32 : i32
    %80 = arith.index_cast %79 : i32 to index
    %81 = memref.load %arg1[%80] : memref<32xi32, #tpu.memory_space<smem>>
    %82 = arith.index_cast %81 : i32 to index
    %c0_26 = arith.constant 0 : index
    %83 = vector.load %arg2[%82, %c0_26] : memref<512x128xf32, #tpu.memory_space<vmem>>, vector<1x128xf32>
    %c13 = arith.constant 13 : index
    %c0_27 = arith.constant 0 : index
    %84 = vector.load %arg5[%c13, %c0_27] : memref<16x128xf32, #tpu.memory_space<vmem>>, vector<1x128xf32>
    tpu.vector_store %arg5[%c13, %c0_27], %83 {strides = array<i32>} : memref<16x128xf32, #tpu.memory_space<vmem>>, vector<1x128xf32>,
    %c14_i32 = arith.constant 14 : i32
    %85 = arith.addi %0, %c14_i32 : i32
    %86 = arith.index_cast %85 : i32 to index
    %87 = memref.load %arg1[%86] : memref<32xi32, #tpu.memory_space<smem>>
    %88 = arith.index_cast %87 : i32 to index
    %c0_28 = arith.constant 0 : index
    %89 = vector.load %arg2[%88, %c0_28] : memref<512x128xf32, #tpu.memory_space<vmem>>, vector<1x128xf32>
    %c14 = arith.constant 14 : index
    %c0_29 = arith.constant 0 : index
    %90 = vector.load %arg5[%c14, %c0_29] : memref<16x128xf32, #tpu.memory_space<vmem>>, vector<1x128xf32>
    tpu.vector_store %arg5[%c14, %c0_29], %89 {strides = array<i32>} : memref<16x128xf32, #tpu.memory_space<vmem>>, vector<1x128xf32>,
    %c15_i32 = arith.constant 15 : i32
    %91 = arith.addi %0, %c15_i32 : i32
    %92 = arith.index_cast %91 : i32 to index
    %93 = memref.load %arg1[%92] : memref<32xi32, #tpu.memory_space<smem>>
    %94 = arith.index_cast %93 : i32 to index
    %c0_30 = arith.constant 0 : index
    %95 = vector.load %arg2[%94, %c0_30] : memref<512x128xf32, #tpu.memory_space<vmem>>, vector<1x128xf32>
    %c15 = arith.constant 15 : index
    %c0_31 = arith.constant 0 : index
    %96 = vector.load %arg5[%c15, %c0_31] : memref<16x128xf32, #tpu.memory_space<vmem>>, vector<1x128xf32>
    tpu.vector_store %arg5[%c15, %c0_31], %95 {strides = array<i32>} : memref<16x128xf32, #tpu.memory_space<vmem>>, vector<1x128xf32>,
    %c1_i32_32 = arith.constant 1 : i32
    %c0_i32_33 = arith.constant 0 : i32
    %97 = arith.cmpi eq, %c1_i32_32, %c0_i32_33 : i32
    %c1_i32_34 = arith.constant 1 : i32
    %98 = arith.select %97, %c1_i32_34, %c1_i32_32 : i32
    %99 = arith.remsi %arg0, %98 : i32
    %c0_i32_35 = arith.constant 0 : i32
    %100 = arith.cmpi ne, %99, %c0_i32_35 : i32
    %c0_i32_36 = arith.constant 0 : i32
    %101 = arith.cmpi slt, %99, %c0_i32_36 : i32
    %c0_i32_37 = arith.constant 0 : i32
    %102 = arith.cmpi slt, %98, %c0_i32_37 : i32
    %103 = arith.xori %101, %102 : i1
    %104 = arith.andi %103, %100 : i1
    %105 = arith.addi %99, %98 : i32
    %106 = arith.select %104, %105, %99 : i32
    %c16_i32_38 = arith.constant 16 : i32
    %107 = arith.muli %106, %c16_i32_38 : i32
    %108 = tpu.assume_multiple %107, 16 : i32
    %c0_39 = arith.constant 0 : index
    %c0_40 = arith.constant 0 : index
    %109 = vector.load %arg5[%c0_39, %c0_40] : memref<16x128xf32, #tpu.memory_space<vmem>>, vector<16x128xf32>
    %110 = arith.index_cast %108 : i32 to index
    %c0_41 = arith.constant 0 : index
    %111 = vector.load %arg3[%110, %c0_41] : memref<16x128xf32, #tpu.memory_space<vmem>>, vector<16x128xf32>
    %112 = arith.addf %109, %111 : vector<16x128xf32>
    %c0_42 = arith.constant 0 : index
    %c0_43 = arith.constant 0 : index
    %113 = vector.load %arg4[%c0_42, %c0_43] : memref<16x128xf32, #tpu.memory_space<vmem>>, vector<16x128xf32>
    tpu.vector_store %arg4[%c0_42, %c0_43], %112 {strides = array<i32>} : memref<16x128xf32, #tpu.memory_space<vmem>>, vector<16x128xf32>,
    return
  }
  func.func @transform_0(%arg0: i32, %arg1: memref<32xi32, #tpu.memory_space<smem>>) -> (i32, i32) {
    %c0_i32 = arith.constant 0 : i32
    %c0_i32_0 = arith.constant 0 : i32
    %c0_i32_1 = arith.constant 0 : i32
    return %c0_i32, %c0_i32_0 : i32, i32
  }
  func.func @transform_1(%arg0: i32, %arg1: memref<32xi32, #tpu.memory_space<smem>>) -> (i32, i32) {
    %c0_i32 = arith.constant 0 : i32
    %c0_i32_0 = arith.constant 0 : i32
    %c0_i32_1 = arith.constant 0 : i32
    return %c0_i32, %c0_i32_0 : i32, i32
  }
  func.func @transform_2(%arg0: i32, %arg1: memref<32xi32, #tpu.memory_space<smem>>) -> (i32, i32) {
    %c0_i32 = arith.constant 0 : i32
    %c0_i32_0 = arith.constant 0 : i32
    return %arg0, %c0_i32 : i32, i32
  }
}

</mosaic_0001>

<llo_original>
// kernel: tpu_custom_call.1
$region0: #{tpu_custom_call.1}
  #allocation0 [shape = 'u32[]', space=smem, size = 0x4, offset = 0x4, fixed_abs, tag = 'smem constant byte address 0x4 - core index']
  #allocation1 [shape = 'u32[72,128]{1,0:T(1,128)}', space=vmem, size = 0x9000, scoped, tag = 'internal scratch']
  #allocation2 [shape = 'f32[16,128]{1,0:T(8,128)}', space=vmem, size = 0x2000, scoped, tag = 'scratch operand']
  #allocation3 [shape = 's32[1]{0}', space=sflag, size = 0x4, scoped, tag = 'scoped memory for tpu_custom_call.1']
  #allocation4 [shape = 'u8[512]{0}', space=smem, size = 0x200, scoped, tag = 'prefetched SMEM operand 0']
  %s0 = inlined_call_operand.hbm [shape: s32[32], index: 0, kind: input, shape index: {}]
  %s1 = inlined_call_operand.hbm [shape: f32[512,128], index: 1, kind: input, shape index: {}]
  %s2 = inlined_call_operand.hbm [shape: f32[16,128], index: 2, kind: input, shape index: {}]
  %s3 = inlined_call_operand.hbm [shape: f32[32,128], index: 3, kind: output, shape index: {}]
  %s4 = sld [smem:[#allocation0]]
  $region49: #{tpu_custom_call.1} parent=0
    _
  %s6 = ssub.s32 1, %s4
  %s7 = scalar_select 0, %s6, %s4
  %s9 = sshll.u32 %s0, 4
  %s10 = int_to_ptr.hbm [resolvable:$true] %s9
  %12 = dma.hbm_to_smem %s10, 16, [#allocation4], [#allocation3]
  %14 = dma.done [#allocation3], 16
  %15 = sfence
  $region1: #{tpu_custom_call.1} parent=0
    #allocation5 [shape = 'u8[262144]{0}', space=vmem, size = 0x40000, scoped, tag = 'input window, operand 1, single buffered']
    #allocation6 [shape = 's32[2]{0}', space=sflag, size = 0x8, scoped, tag = 'scoped memory for tpu_custom_call.1']
    #allocation7 [shape = 's32[2]{0}', space=sflag, size = 0x8, scoped, tag = 'scoped memory for tpu_custom_call.1']
    #allocation8 [shape = 'u8[8192]{0}', space=vmem, size = 0x2000, scoped, tag = 'input window, operand 2, single buffered']
    #allocation9 [shape = 's32[1]{0}', space=sflag, size = 0x4, scoped, tag = 'scoped memory for tpu_custom_call.1']
    #allocation10 [shape = 'u8[16384]{0}', space=vmem, size = 0x4000, scoped, tag = 'output window, operand 0']
    %16 = vsyncpa [#allocation6], 0
    %17 = vsyncpa [#allocation9], 0
    %18 = vsyncpa [#allocation7], 0
    %s19 = scalar_lea.sflag [#allocation7], 1
    %20 = vsyncpa %s19, 0
    loop: start=0, step=1, limit=4
    $region2: #{tpu_custom_call.1} parent=1 // loop_pre_header
      _
    $region3: #{tpu_custom_call.1} parent=1 // loop_header
      %s22 = sphi 0, %s26
      %p23 = scmp.ge.s32.totalorder %s22, 4
      %s30 = sphi 0, %s30
      %s32 = sphi 0, %s30
      %s33 = sphi 0, %s32
      %s47 = sphi 0, %s33
      %s51 = sphi 0, %s51
      %s53 = sphi 0, %s51
      %s54 = sphi 0, %s53
      %s68 = sphi 0, %s54
      %s74 = sphi 0, %s76
      %s77 = sphi 0, %s74
      %s78 = sphi 0, %s77
      %s94 = sphi 0, %s78
    $region4: #{tpu_custom_call.1} parent=1 // loop_header_branch
      %25 = sbr.rel (%p23) target = $region8
    $region5: #{tpu_custom_call.1} parent=1 // loop_body
      %s27 = ssub.s32 %s22, 1
      %s28 = ssub.s32 %s22, 2
      %s29 = sadd.s32 %s22, 1
      %s31 = sadd.s32 %s30, 1
      %p34 = scmp.eq.s32.totalorder %s22, 1
      %p35 = scmp.ne.s32.totalorder %s30, %s32
      %p36 = scmp.eq.s32.totalorder %s22, 0
      %p37 = por %p35, %p36
      %p38 = scmp.ne.s32.totalorder %s30, %s32
      %p39 = scmp.eq.s32.totalorder %s27, 1
      %p40 = por %p38, %p39
      %p41 = scmp.ne.s32.totalorder %s32, %s33
      %p42 = scmp.eq.s32.totalorder %s27, 0
      %p43 = por %p41, %p42
      %p44 = scmp.ne.s32.totalorder %s32, %s33
      %p45 = scmp.eq.s32.totalorder %s28, 1
      %p46 = por %p44, %p45
      %p48 = scmp.ne.s32.totalorder %s33, %s47
      %p49 = scmp.eq.s32.totalorder %s28, 0
      %p50 = por %p48, %p49
      %s52 = sadd.s32 %s51, 1
      %p55 = scmp.eq.s32.totalorder %s22, 1
      %p56 = scmp.ne.s32.totalorder %s51, %s53
      %p57 = scmp.eq.s32.totalorder %s22, 0
      %p58 = por %p56, %p57
      %p59 = scmp.ne.s32.totalorder %s51, %s53
      %p60 = scmp.eq.s32.totalorder %s27, 1
      %p61 = por %p59, %p60
      %p62 = scmp.ne.s32.totalorder %s53, %s54
      %p63 = scmp.eq.s32.totalorder %s27, 0
      %p64 = por %p62, %p63
      %p65 = scmp.ne.s32.totalorder %s53, %s54
      %p66 = scmp.eq.s32.totalorder %s28, 1
      %p67 = por %p65, %p66
      %p69 = scmp.ne.s32.totalorder %s54, %s68
      %p70 = scmp.eq.s32.totalorder %s28, 0
      %p71 = por %p69, %p70
      %s72 = ssub.s32 %s22, %s29
      %p73 = scmp.eq.s32.totalorder %s72, 0
      %s75 = sadd.s32 %s74, 1
      %s76 = scalar_select %p73, %s74, %s75
      %p79 = pneg %p73
      %p80 = scmp.eq.s32.totalorder %s22, 1
      %p81 = por %p79, %p80
      %p82 = scmp.ne.s32.totalorder %s74, %s77
      %p83 = scmp.eq.s32.totalorder %s22, 0
      %p84 = por %p82, %p83
      %p85 = scmp.ne.s32.totalorder %s74, %s77
      %p86 = scmp.eq.s32.totalorder %s27, 1
      %p87 = por %p85, %p86
      %p88 = scmp.ne.s32.totalorder %s77, %s78
      %p89 = scmp.eq.s32.totalorder %s27, 0
      %p90 = por %p88, %p89
      %p91 = scmp.ne.s32.totalorder %s77, %s78
      %p92 = scmp.eq.s32.totalorder %s28, 1
      %p93 = por %p91, %p92
      %p95 = scmp.ne.s32.totalorder %s78, %s94
      %p96 = scmp.eq.s32.totalorder %s28, 0
      %p97 = por %p95, %p96
      %p98 = scmp.le.s32.totalorder 1, %s22
      %p99 = scmp.lt.s32.totalorder %s22, 3
      %p100 = pnand %p98, %p99
      %p101 = pneg %p100
      // Predicated region
      $region9: #{tpu_custom_call.1} parent=5 // pred_check
        _
      $region10: #{tpu_custom_call.1} parent=5 // pred_check_branch
        %103 = sbr.rel (%p100) target = $region12
      $region11: #{tpu_custom_call.1} parent=5 // pred_region
        %s104 = ssub.s32 %s22, 1
        // Predicated region
        $region13: #{tpu_custom_call.1} parent=11 // pred_check
          %p105 = pneg %p43
        $region14: #{tpu_custom_call.1} parent=11 // pred_check_branch
          %107 = sbr.rel (%p105) target = $region16
        $region15: #{tpu_custom_call.1} parent=11 // pred_region
          %109 = vsyncadd [#allocation6], 0
          %s110 = sshll.u32 %s1, 4
          %s111 = int_to_ptr.hbm [resolvable:$true] %s110
          %s112 = sshll.u32 [#allocation5], 4
          %s113 = int_to_ptr.vmem [resolvable:$true] %s112
          %118 = dma.hbm_to_vmem [thread:$0]  %s111, 8192, %s113, [#allocation6], 128, 128, 8
        $region16: #{tpu_custom_call.1} parent=11 // pred_fallthru
          _
        // Predicated region
        $region17: #{tpu_custom_call.1} parent=11 // pred_check
          %p119 = pneg %p64
        $region18: #{tpu_custom_call.1} parent=11 // pred_check_branch
          %121 = sbr.rel (%p119) target = $region20
        $region19: #{tpu_custom_call.1} parent=11 // pred_region
          %123 = vsyncadd [#allocation9], 0
          %s124 = sshll.u32 %s2, 4
          %s125 = int_to_ptr.hbm [resolvable:$true] %s124
          %s126 = sshll.u32 [#allocation8], 4
          %s127 = int_to_ptr.vmem [resolvable:$true] %s126
          %132 = dma.hbm_to_vmem [thread:$0]  %s125, 256, %s127, [#allocation9], 128, 128, 8
        $region20: #{tpu_custom_call.1} parent=11 // pred_fallthru
          _
      $region12: #{tpu_custom_call.1} parent=5 // pred_fallthru
        _
      %p133 = scmp.lt.s32.totalorder %s22, 2
      // Predicated region
      $region21: #{tpu_custom_call.1} parent=5 // pred_check
        %p134 = pneg %p133
      $region22: #{tpu_custom_call.1} parent=5 // pred_check_branch
        %136 = sbr.rel (%p134) target = $region24
      $region23: #{tpu_custom_call.1} parent=5 // pred_region
        _
      $region24: #{tpu_custom_call.1} parent=5 // pred_fallthru
        _
      %p137 = scmp.le.s32.totalorder 1, %s22
      %p138 = scmp.lt.s32.totalorder %s22, 3
      %p139 = pnand %p137, %p138
      %p140 = pneg %p139
      // Predicated region
      $region25: #{tpu_custom_call.1} parent=5 // pred_check
        _
      $region26: #{tpu_custom_call.1} parent=5 // pred_check_branch
        %142 = sbr.rel (%p139) target = $region28
      $region27: #{tpu_custom_call.1} parent=5 // pred_region
        %s143 = ssub.s32 %s22, 1
        // Predicated region
        $region29: #{tpu_custom_call.1} parent=27 // pred_check
          %p144 = pneg %p43
        $region30: #{tpu_custom_call.1} parent=27 // pred_check_branch
          %146 = sbr.rel (%p144) target = $region32
        $region31: #{tpu_custom_call.1} parent=27 // pred_region
          %148 = dma.done [#allocation6], 8192
        $region32: #{tpu_custom_call.1} parent=27 // pred_fallthru
          _
        // Predicated region
        $region33: #{tpu_custom_call.1} parent=27 // pred_check
          %p149 = pneg %p64
        $region34: #{tpu_custom_call.1} parent=27 // pred_check_branch
          %151 = sbr.rel (%p149) target = $region36
        $region35: #{tpu_custom_call.1} parent=27 // pred_region
          %153 = dma.done [#allocation9], 256
        $region36: #{tpu_custom_call.1} parent=27 // pred_fallthru
          _
        %p154 = pneg %p43
        %p155 = pneg %p40
        %p156 = pneg %p64
        %p157 = pneg %p61
        %p158 = pneg %p90
        %p159 = pneg %p87
        %s160 = sand.u32 %s77, 1
        %s161 = scalar_lea.sflag [#allocation7], %s160
        %s162 = sand.u32 %s77, 1
        %s163 = smul.addr %s162, 16
        %s164 = scalar_lea.vmem [#allocation10], %s163
        %s165 = smul.u32 2, %s27
        %s166 = smul.u32 %s27, 16
        %s167 = sld [smem:[#allocation4 + %s166]]
        %s168 = scalar_lea.vmem [#allocation5], %s167
        %v169 = vld [vmem:[%s168] sm:$0x1]
        %170 = vst [vmem:[#allocation2] sm:$0x1] %v169
        %s171 = sadd.s32 %s166, 1
        %s172 = sld [smem:[#allocation4 + %s171]]
        %s173 = scalar_lea.vmem [#allocation5], %s172
        %v174 = vld [vmem:[%s173] sm:$0x1]
        %175 = vst [vmem:[#allocation2 + $0x1] sm:$0x1] %v174
        %s176 = sadd.s32 %s166, 2
        %s177 = sld [smem:[#allocation4 + %s176]]
        %s178 = scalar_lea.vmem [#allocation5], %s177
        %v179 = vld [vmem:[%s178] sm:$0x1]
        %180 = vst [vmem:[#allocation2 + $0x2] sm:$0x1] %v179
        %s181 = sadd.s32 %s166, 3
        %s182 = sld [smem:[#allocation4 + %s181]]
        %s183 = scalar_lea.vmem [#allocation5], %s182
        %v184 = vld [vmem:[%s183] sm:$0x1]
        %185 = vst [vmem:[#allocation2 + $0x3] sm:$0x1] %v184
        %s186 = sadd.s32 %s166, 4
        %s187 = sld [smem:[#allocation4 + %s186]]
        %s188 = scalar_lea.vmem [#allocation5], %s187
        %v189 = vld [vmem:[%s188] sm:$0x1]
        %190 = vst [vmem:[#allocation2 + $0x4] sm:$0x1] %v189
        %s191 = sadd.s32 %s166, 5
        %s192 = sld [smem:[#allocation4 + %s191]]
        %s193 = scalar_lea.vmem [#allocation5], %s192
        %v194 = vld [vmem:[%s193] sm:$0x1]
        %195 = vst [vmem:[#allocation2 + $0x5] sm:$0x1] %v194
        %s196 = sadd.s32 %s166, 6
        %s197 = sld [smem:[#allocation4 + %s196]]
        %s198 = scalar_lea.vmem [#allocation5], %s197
        %v199 = vld [vmem:[%s198] sm:$0x1]
        %200 = vst [vmem:[#allocation2 + $0x6] sm:$0x1] %v199
        %s201 = sadd.s32 %s166, 7
        %s202 = sld [smem:[#allocation4 + %s201]]
        %s203 = scalar_lea.vmem [#allocation5], %s202
        %v204 = vld [vmem:[%s203] sm:$0x1]
        %205 = vst [vmem:[#allocation2 + $0x7] sm:$0x1] %v204
        %s206 = sadd.s32 %s166, 8
        %s207 = sld [smem:[#allocation4 + %s206]]
        %s208 = scalar_lea.vmem [#allocation5], %s207
        %v209 = vld [vmem:[%s208] sm:$0x1]
        %210 = vst [vmem:[#allocation2 + $0x8] sm:$0x1] %v209
        %s211 = sadd.s32 %s166, 9
        %s212 = sld [smem:[#allocation4 + %s211]]
        %s213 = scalar_lea.vmem [#allocation5], %s212
        %v214 = vld [vmem:[%s213] sm:$0x1]
        %215 = vst [vmem:[#allocation2 + $0x9] sm:$0x1] %v214
        %s216 = sadd.s32 %s166, 10
        %s217 = sld [smem:[#allocation4 + %s216]]
        %s218 = scalar_lea.vmem [#allocation5], %s217
        %v219 = vld [vmem:[%s218] sm:$0x1]
        %220 = vst [vmem:[#allocation2 + $0xa] sm:$0x1] %v219
        %s221 = sadd.s32 %s166, 11
        %s222 = sld [smem:[#allocation4 + %s221]]
        %s223 = scalar_lea.vmem [#allocation5], %s222
        %v224 = vld [vmem:[%s223] sm:$0x1]
        %225 = vst [vmem:[#allocation2 + $0xb] sm:$0x1] %v224
        %s226 = sadd.s32 %s166, 12
        %s227 = sld [smem:[#allocation4 + %s226]]
        %s228 = scalar_lea.vmem [#allocation5], %s227
        %v229 = vld [vmem:[%s228] sm:$0x1]
        %230 = vst [vmem:[#allocation2 + $0xc] sm:$0x1] %v229
        %s231 = sadd.s32 %s166, 13
        %s232 = sld [smem:[#allocation4 + %s231]]
        %s233 = scalar_lea.vmem [#allocation5], %s232
        %v234 = vld [vmem:[%s233] sm:$0x1]
        %235 = vst [vmem:[#allocation2 + $0xd] sm:$0x1] %v234
        %s236 = sadd.s32 %s166, 14
        %s237 = sld [smem:[#allocation4 + %s236]]
        %s238 = scalar_lea.vmem [#allocation5], %s237
        %v239 = vld [vmem:[%s238] sm:$0x1]
        %240 = vst [vmem:[#allocation2 + $0xe] sm:$0x1] %v239
        %s241 = sadd.s32 %s166, 15
        %s242 = sld [smem:[#allocation4 + %s241]]
        %s243 = scalar_lea.vmem [#allocation5], %s242
        %v244 = vld [vmem:[%s243] sm:$0x1]
        %245 = vst [vmem:[#allocation2 + $0xf] sm:$0x1] %v244
        %v246 = vld [vmem:[#allocation2] sm:$0xff]
        %v247 = vld [vmem:[#allocation2 + $0x8] sm:$0xff]
        %v248 = vld [vmem:[#allocation8] sm:$0xff]
        %v249 = vld [vmem:[#allocation8 + $0x8] sm:$0xff]
        %v250 = vadd.f32 %v246, %v248
        %v251 = vadd.f32 %v247, %v249
        %252 = vst [vmem:[%s164] sm:$0xff] %v250
        %253 = vst [vmem:[%s164 + $0x8] sm:$0xff] %v251
        %s254 = sand.u32 %s77, 1
        %s255 = scalar_lea.sflag [#allocation7], %s254
        %s256 = sand.u32 %s77, 1
        %s257 = smul.addr %s256, 16
        %s258 = scalar_lea.vmem [#allocation10], %s257
        // Predicated region
        $region37: #{tpu_custom_call.1} parent=27 // pred_check
          %p259 = pneg %p87
        $region38: #{tpu_custom_call.1} parent=27 // pred_check_branch
          %261 = sbr.rel (%p259) target = $region40
        $region39: #{tpu_custom_call.1} parent=27 // pred_region
          %s262 = smul.u32 2, %s27
          %264 = vsyncadd %s255, 0
          %s265 = smul.addr %s262, 8
          %s266 = scalar_lea.hbm %s3, %s265
          %s267 = sshll.u32 %s258, 4
          %s268 = int_to_ptr.vmem [resolvable:$true] %s267
          %s269 = sshll.u32 %s266, 4
          %s270 = int_to_ptr.hbm [resolvable:$true] %s269
          %275 = dma.vmem_to_hbm [thread:$0]  %s268, 256, %s270, %s255, 128, 128, 8
        $region40: #{tpu_custom_call.1} parent=27 // pred_fallthru
          _
      $region28: #{tpu_custom_call.1} parent=5 // pred_fallthru
        _
      %p276 = scmp.le.s32.totalorder 2, %s22
      // Predicated region
      $region41: #{tpu_custom_call.1} parent=5 // pred_check
        %p277 = pneg %p276
      $region42: #{tpu_custom_call.1} parent=5 // pred_check_branch
        %279 = sbr.rel (%p277) target = $region44
      $region43: #{tpu_custom_call.1} parent=5 // pred_region
        %s280 = ssub.s32 %s22, 2
        // Predicated region
        $region45: #{tpu_custom_call.1} parent=43 // pred_check
          %p281 = pneg %p93
        $region46: #{tpu_custom_call.1} parent=43 // pred_check_branch
          %283 = sbr.rel (%p281) target = $region48
        $region47: #{tpu_custom_call.1} parent=43 // pred_region
          %s284 = sand.u32 %s78, 1
          %s285 = scalar_lea.sflag [#allocation7], %s284
          %s286 = sand.u32 %s78, 1
          %s287 = smul.addr %s286, 16
          %s288 = scalar_lea.vmem [#allocation10], %s287
          %290 = dma.done %s285, 256
        $region48: #{tpu_custom_call.1} parent=43 // pred_fallthru
          _
      $region44: #{tpu_custom_call.1} parent=5 // pred_fallthru
        _
    $region6: #{tpu_custom_call.1} parent=1 // loop_footer
      %s26 = sadd.s32 1, %s22
    $region7: #{tpu_custom_call.1} parent=1 // loop_footer_branch
      %21 = sbr.rel target = $region3
    $region8: #{tpu_custom_call.1} parent=1 // loop_exit
      _
    %291 = vsyncpa [#allocation6], 1
    %s292 = scalar_lea.sflag [#allocation6], 1
    %293 = vsyncpa %s292, 1
    %294 = vsyncpa [#allocation9], 1
    %295 = vsyncpa [#allocation7], 1
    %s296 = scalar_lea.sflag [#allocation7], 1
    %297 = vsyncpa %s296, 1

</llo_original>
